<compile_context>
chip_gen: v7x
topology: tpu7x:2x2x1
jax: 0.10.0
libtpu: 0.0.40
codegen_flags: <defaults>
</compile_context>

<pallas_src>
import functools

import jax
import jax.numpy as jnp
import numpy as np
from jax import lax
from jax.experimental import pallas as pl
from jax.experimental.pallas import tpu as pltpu

LANE = 128


def _round_up(x, m):
    return ((x + m - 1) // m) * m


def _vmem_limit_bytes():
    """Scoped-VMEM limit with headroom, derived from the running chip."""
    cap = 64 * 1024 * 1024
    try:
        cap = int(getattr(pltpu.get_tpu_info(), "vmem_capacity_bytes", cap))
    except Exception:
        pass
    # Leave ~25% for compiler-internal scratch / pipelining overhead (matters on v7x
    # where physical VMEM per TensorCore is only 64 MiB).
    return max((cap * 3) // 4, 32 * 1024 * 1024)


def _pick_tile(total, chans, itemsize, byte_budget, target):
    """Largest multiple-of-128 lane tile whose double-buffered (chans, tile) block
    fits in byte_budget, capped by `target` and the (rounded-up) total extent."""
    by_budget = byte_budget // (2 * max(chans, 1) * itemsize)
    by_budget = max((by_budget // LANE) * LANE, LANE)
    return min(_round_up(total, LANE), _round_up(target, LANE), by_budget)


# ---------------------------------------------------------------------------
# Kernel A: tiled global sum over H*W (one HW split of one image per (s, b)).
#   x_ref:   (1, C_in, hw_tile)   native-dtype tile of the flattened input
#   o_ref:   (1, C_in, 1)         fp32 per-(split, image) channel sums
#   acc_ref: (C_in, 128)          fp32 lane-parallel partial sums (VMEM scratch)
# ---------------------------------------------------------------------------
def _pool_sum_kernel(x_ref, o_ref, acc_ref, *, hw_total):
    k = pl.program_id(2)
    hw_tile = x_ref.shape[-1]

    @pl.when(k == 0)
    def _():
        acc_ref[...] = jnp.zeros_like(acc_ref)

    xv = x_ref[0].astype(jnp.float32)                      # (C_in, hw_tile)

    def accumulate(tile):
        # Pure VPU adds of static, lane-aligned 128-wide slices -- no per-tile XLU
        # reduce and no relayout; MXU/XLU stay free, the DMA stays the bottleneck.
        acc = acc_ref[...]
        for j in range(hw_tile // LANE):
            acc = acc + tile[:, j * LANE:(j + 1) * LANE]
        acc_ref[...] = acc

    rem = hw_total % hw_tile
    if rem == 0:
        accumulate(xv)
    else:
        # Only the globally-last tile can run past H*W; mask just that one, built
        # from a (1, hw_tile) iota rather than the full (C_in, hw_tile) tile.
        is_last_global = jnp.logical_and(
            pl.program_id(0) == pl.num_programs(0) - 1,
            k == pl.num_programs(2) - 1)

        @pl.when(jnp.logical_not(is_last_global))
        def _():
            accumulate(xv)

        @pl.when(is_last_global)
        def _():
            lane_idx = lax.broadcasted_iota(jnp.int32, (1, hw_tile), 1)
            accumulate(jnp.where(lane_idx < rem, xv, 0.0))

    @pl.when(k == pl.num_programs(2) - 1)
    def _():
        # One cross-lane reduce per (split, image) -- off the per-tile critical path.
        o_ref[...] = jnp.sum(acc_ref[...], axis=-1, keepdims=True)[None]


# ---------------------------------------------------------------------------
# Kernel B: tiny per-image epilogue. Combines split partial sums, applies the
# 1x1 conv (BN scale and 1/(H*W) folded into the weight), bias add, ReLU.
#   p_ref: (num_splits, C_in, 1) fp32   w_ref: (C_out, C_in) fp32
#   b_ref: (C_out, 1) fp32              y_ref: (1, C_out, 1) fp32
# ---------------------------------------------------------------------------
def _conv_bn_relu_kernel(p_ref, w_ref, b_ref, y_ref):
    pooled = jnp.sum(p_ref[...], axis=0)                                   # (C_in, 1)
    y = jnp.dot(w_ref[...], pooled, preferred_element_type=jnp.float32)    # (C_out, 1)
    y_ref[...] = jnp.maximum(y + b_ref[...], 0.0)[None]


# ---------------------------------------------------------------------------
# Kernel C: nearest-upsample of a 1x1 map == lane-dense broadcast writeback.
#   y_ref: (1, C_out, 1) fp32   o_ref: (1, C_out, hw_out_tile) out dtype
# ---------------------------------------------------------------------------
def _broadcast_kernel(y_ref, o_ref):
    o_ref[...] = jnp.broadcast_to(y_ref[...].astype(o_ref.dtype), o_ref.shape)


def pyramid_pooling_zero_branch(x, weight, bn_gamma, bn_beta, bn_mean, bn_var,
                                in_size, eps=1e-5,
                                hw_tile_target=2048, hw_out_tile_target=8192):
    """x: [N, C_in, H, W] (NCHW). weight: [C_out, C_in, 1, 1]. Returns [N, C_out, *in_size]."""
    n, c_in, h, w = x.shape
    c_out = weight.shape[0]
    h_out, w_out = in_size
    hw = h * w
    hw_out = h_out * w_out

    # x stays in its native dtype (bf16 stays bf16 -> half the HBM read bytes);
    # accumulation happens in fp32 inside the kernel.
    x_flat = x.reshape(n, c_in, hw)

    # Fold BN (eval mode) and the 1/(H*W) mean factor into the conv weight.
    scale = bn_gamma.astype(jnp.float32) / jnp.sqrt(bn_var.astype(jnp.float32) + eps)
    w_scaled = (weight.reshape(c_out, c_in).astype(jnp.float32)
                * (scale / float(hw))[:, None])                       # (C_out, C_in)
    bias_col = (bn_beta.astype(jnp.float32)
                - bn_mean.astype(jnp.float32) * scale)[:, None]       # (C_out, 1)

    vmem_limit = _vmem_limit_bytes()

    # ---- Phase A: tiled global sum over H*W ------------------------------------------
    hw_tile = _pick_tile(hw, c_in, x.dtype.itemsize, vmem_limit // 2, hw_tile_target)
    num_k = pl.cdiv(hw, hw_tile)

    # Leading parallel axis: split the reduction in two so both TensorCores of a
    # dual-core chip (v7x) have work even when N == 1 (same total tiles elsewhere).
    num_splits = 2 if (num_k >= 2 and num_k % 2 == 0) else 1
    tiles_per_split = num_k // num_splits

    sums = pl.pallas_call(
        functools.partial(_pool_sum_kernel, hw_total=hw),
        out_shape=jax.ShapeDtypeStruct((n * num_splits, c_in, 1), jnp.float32),
        grid_spec=pltpu.PrefetchScalarGridSpec(
            num_scalar_prefetch=0,
            grid=(num_splits, n, tiles_per_split),
            in_specs=[
                pl.BlockSpec((1, c_in, hw_tile),
                             lambda s, b, k: (b, 0, s * tiles_per_split + k)),
            ],
            out_specs=pl.BlockSpec((1, c_in, 1),
                                   lambda s, b, k: (b * num_splits + s, 0, 0)),
            scratch_shapes=[pltpu.VMEM((c_in, LANE), jnp.float32)],
        ),
        compiler_params=pltpu.CompilerParams(
            dimension_semantics=("parallel", "parallel", "arbitrary"),
            vmem_limit_bytes=vmem_limit,
        ),
    )(x_flat)

    # ---- Phase B: per-image 1x1 conv + BN + ReLU (weights never resident in phase A) --
    y_col = pl.pallas_call(
        _conv_bn_relu_kernel,
        out_shape=jax.ShapeDtypeStruct((n, c_out, 1), jnp.float32),
        grid_spec=pltpu.PrefetchScalarGridSpec(
            num_scalar_prefetch=0,
            grid=(n,),
            in_specs=[
                pl.BlockSpec((num_splits, c_in, 1), lambda b: (b, 0, 0)),
                pl.BlockSpec((c_out, c_in), lambda b: (0, 0)),
                pl.BlockSpec((c_out, 1), lambda b: (0, 0)),
            ],
            out_specs=pl.BlockSpec((1, c_out, 1), lambda b: (b, 0, 0)),
        ),
        compiler_params=pltpu.CompilerParams(
            dimension_semantics=("parallel",),
            vmem_limit_bytes=vmem_limit,
        ),
    )(sums, w_scaled, bias_col)

    # ---- Phase C: nearest-upsample broadcast writeback ---------------------------------
    hw_out_tile = _pick_tile(hw_out, c_out, x.dtype.itemsize, vmem_limit // 2,
                             hw_out_tile_target)
    num_j = pl.cdiv(hw_out, hw_out_tile)

    out = pl.pallas_call(
        _broadcast_kernel,
        out_shape=jax.ShapeDtypeStruct((n, c_out, hw_out), x.dtype),
        grid_spec=pltpu.PrefetchScalarGridSpec(
            num_scalar_prefetch=0,
            grid=(n, num_j),
            in_specs=[pl.BlockSpec((1, c_out, 1), lambda b, j: (b, 0, 0))],
            out_specs=pl.BlockSpec((1, c_out, hw_out_tile), lambda b, j: (b, 0, j)),
        ),
        compiler_params=pltpu.CompilerParams(
            dimension_semantics=("parallel", "parallel"),
            vmem_limit_bytes=vmem_limit,
        ),
    )(y_col)

    return out.reshape(n, c_out, h_out, w_out)


def _reference(x, weight, bn_gamma, bn_beta, bn_mean, bn_var, in_size, eps=1e-5):
    # Pure-JAX reference of the PyTorch forward (eval-mode BN).
    n, c_in, h, w = x.shape
    c_out = weight.shape[0]
    pooled = jnp.mean(x.astype(jnp.float32), axis=(2, 3))                  # (N, C_in)
    y = pooled @ weight.reshape(c_out, c_in).T.astype(jnp.float32)         # (N, C_out)
    scale = bn_gamma / jnp.sqrt(bn_var + eps)
    y = (y - bn_mean) * scale + bn_beta
    y = jnp.maximum(y, 0.0)
    y = y[:, :, None, None]
    return jnp.broadcast_to(y, (n, c_out, in_size[0], in_size[1])).astype(x.dtype)


if __name__ == "__main__":
    root = jax.random.PRNGKey(0)

    cases = [
        # default tiles, single HW tile, no masking
        dict(n=2, c_in=4, c_out=8, h=16, w=16, in_size=(16, 16),
             dtype=jnp.float32, kwargs={}, rtol=1e-5, atol=1e-5),
        # multi-tile reduction + dual HW split + masked last tile + partial out blocks
        dict(n=1, c_in=8, c_out=16, h=20, w=20, in_size=(24, 24),
             dtype=jnp.float32,
             kwargs=dict(hw_tile_target=128, hw_out_tile_target=256),
             rtol=1e-5, atol=1e-5),
        # bf16 input/output path (native-dtype HBM reads, fp32 in-kernel accumulation)
        dict(n=2, c_in=4, c_out=8, h=16, w=16, in_size=(16, 16),
             dtype=jnp.bfloat16, kwargs={}, rtol=1e-2, atol=1e-2),
    ]

    keys = jax.random.split(root, len(cases))
    for case, key in zip(cases, keys):
        kx, kw_, kg, kb, km, kv = jax.random.split(key, 6)
        n, c_in, c_out = case["n"], case["c_in"], case["c_out"]
        h, w = case["h"], case["w"]

        x = jax.random.normal(kx, (n, c_in, h, w), dtype=jnp.float32).astype(case["dtype"])
        weight = 0.1 * jax.random.normal(kw_, (c_out, c_in, 1, 1), dtype=jnp.float32)
        bn_gamma = 1.0 + 0.1 * jax.random.normal(kg, (c_out,), dtype=jnp.float32)
        bn_beta = 0.1 * jax.random.normal(kb, (c_out,), dtype=jnp.float32)
        bn_mean = 0.05 * jax.random.normal(km, (c_out,), dtype=jnp.float32)
        bn_var = jnp.abs(1.0 + 0.1 * jax.random.normal(kv, (c_out,), dtype=jnp.float32))

        out = pyramid_pooling_zero_branch(x, weight, bn_gamma, bn_beta, bn_mean, bn_var,
                                          case["in_size"], **case["kwargs"])
        out = jax.block_until_ready(out)

        ref = _reference(x, weight, bn_gamma, bn_beta, bn_mean, bn_var, case["in_size"])
        np.testing.assert_allclose(np.asarray(out.astype(jnp.float32)),
                                   np.asarray(ref.astype(jnp.float32)),
                                   rtol=case["rtol"], atol=case["atol"])

    print("KERNEL_OK")
</pallas_src>

<mosaic_0001>
module attributes {stable_mosaic.version = 11 : i64} {
  func.func @_pool_sum_kernel(%arg0: i32, %arg1: i32, %arg2: i32, %arg3: memref<1x4x256xf32, #tpu.memory_space<vmem>>, %arg4: memref<1x4x1xf32, #tpu.memory_space<vmem>>, %arg5: memref<4x128xf32, #tpu.memory_space<vmem>>) attributes {dimension_semantics = [#tpu.dimension_semantics<parallel>, #tpu.dimension_semantics<parallel>, #tpu.dimension_semantics<arbitrary>], iteration_bounds = array<i64: 1, 2, 1>, scalar_prefetch = 0 : i64, scratch_operands = 1 : i64, tpu.core_type = #tpu.core_type<tc>, window_params = [{transform_indices = @transform_0, window_bounds = array<i64: 1, 4, 256>}, {transform_indices = @transform_1, window_bounds = array<i64: 1, 4, 1>}]} {
    %c0_i32 = arith.constant 0 : i32
    %0 = arith.cmpi eq, %arg2, %c0_i32 : i32
    %1 = arith.extui %0 : i1 to i32
    %c0_i32_0 = arith.constant 0 : i32
    %2 = arith.cmpi ne, %1, %c0_i32_0 : i32
    scf.if %2 {
      %cst = arith.constant 0.000000e+00 : f32
      %14 = vector.broadcast %cst : f32 to vector<4x128xf32>
      %c0_9 = arith.constant 0 : index
      %c0_10 = arith.constant 0 : index
      %15 = vector.load %arg5[%c0_9, %c0_10] : memref<4x128xf32, #tpu.memory_space<vmem>>, vector<4x128xf32>
      tpu.vector_store %arg5[%c0_9, %c0_10], %14 {strides = array<i32>} : memref<4x128xf32, #tpu.memory_space<vmem>>, vector<4x128xf32>,
    } else {
    }
    %c0 = arith.constant 0 : index
    %c0_1 = arith.constant 0 : index
    %c0_2 = arith.constant 0 : index
    %3 = vector.load %arg3[%c0, %c0_1, %c0_2] : memref<1x4x256xf32, #tpu.memory_space<vmem>>, vector<1x4x256xf32>
    %4 = vector.shape_cast %3 : vector<1x4x256xf32> to vector<4x256xf32>
    %c0_3 = arith.constant 0 : index
    %c0_4 = arith.constant 0 : index
    %5 = vector.load %arg5[%c0_3, %c0_4] : memref<4x128xf32, #tpu.memory_space<vmem>>, vector<4x128xf32>
    %6 = vector.extract_strided_slice %4 {offsets = [0, 0], sizes = [4, 128], strides = [1, 1]} : vector<4x256xf32> to vector<4x128xf32>
    %7 = arith.addf %5, %6 : vector<4x128xf32>
    %8 = vector.extract_strided_slice %4 {offsets = [0, 128], sizes = [4, 128], strides = [1, 1]} : vector<4x256xf32> to vector<4x128xf32>
    %9 = arith.addf %7, %8 : vector<4x128xf32>
    %c0_5 = arith.constant 0 : index
    %c0_6 = arith.constant 0 : index
    %10 = vector.load %arg5[%c0_5, %c0_6] : memref<4x128xf32, #tpu.memory_space<vmem>>, vector<4x128xf32>
    tpu.vector_store %arg5[%c0_5, %c0_6], %9 {strides = array<i32>} : memref<4x128xf32, #tpu.memory_space<vmem>>, vector<4x128xf32>,
    %c0_i32_7 = arith.constant 0 : i32
    %11 = arith.cmpi eq, %arg2, %c0_i32_7 : i32
    %12 = arith.extui %11 : i1 to i32
    %c0_i32_8 = arith.constant 0 : i32
    %13 = arith.cmpi ne, %12, %c0_i32_8 : i32
    scf.if %13 {
      %c0_9 = arith.constant 0 : index
      %c0_10 = arith.constant 0 : index
      %14 = vector.load %arg5[%c0_9, %c0_10] : memref<4x128xf32, #tpu.memory_space<vmem>>, vector<4x128xf32>
      %cst = arith.constant dense<0.000000e+00> : vector<4xf32>
      %15 = vector.multi_reduction <add>, %14, %cst [1] : vector<4x128xf32> to vector<4xf32>
      %16 = vector.shape_cast %15 : vector<4xf32> to vector<4x1xf32>
      %17 = vector.shape_cast %16 : vector<4x1xf32> to vector<1x4x1xf32>
      %c0_11 = arith.constant 0 : index
      %c0_12 = arith.constant 0 : index
      %c0_13 = arith.constant 0 : index
      %18 = vector.load %arg4[%c0_11, %c0_12, %c0_13] : memref<1x4x1xf32, #tpu.memory_space<vmem>>, vector<1x4x1xf32>
      tpu.vector_store %arg4[%c0_11, %c0_12, %c0_13], %17 {strides = array<i32>} : memref<1x4x1xf32, #tpu.memory_space<vmem>>, vector<1x4x1xf32>,
    } else {
    }
    return
  }
  func.func @transform_0(%arg0: i32, %arg1: i32, %arg2: i32) -> (i32, i32, i32) {
    %c1_i32 = arith.constant 1 : i32
    %0 = arith.muli %arg0, %c1_i32 : i32
    %1 = arith.addi %0, %arg2 : i32
    %c0_i32 = arith.constant 0 : i32
    %c0_i32_0 = arith.constant 0 : i32
    return %arg1, %c0_i32, %1 : i32, i32, i32
  }
  func.func @transform_1(%arg0: i32, %arg1: i32, %arg2: i32) -> (i32, i32, i32) {
    %c1_i32 = arith.constant 1 : i32
    %0 = arith.muli %arg1, %c1_i32 : i32
    %1 = arith.addi %0, %arg0 : i32
    %c0_i32 = arith.constant 0 : i32
    %c0_i32_0 = arith.constant 0 : i32
    %c0_i32_1 = arith.constant 0 : i32
    return %1, %c0_i32, %c0_i32_0 : i32, i32, i32
  }
}

</mosaic_0001>

<llo_original>
// kernel: tpu_custom_call.1
$region0: #{tpu_custom_call.1}
  #allocation0 [shape = 'u32[]', space=smem, size = 0x4, offset = 0x4, fixed_abs, tag = 'smem constant byte address 0x4 - core index']
  #allocation1 [shape = 'u32[144,128]{1,0:T(1,128)}', space=vmem, size = 0x12000, scoped, tag = 'internal scratch']
  #allocation2 [shape = 'f32[4,128]{1,0:T(4,128)}', space=vmem, size = 0x800, scoped, tag = 'scratch operand']
  %s0 = inlined_call_operand.hbm [shape: f32[2,4,256], index: 0, kind: input, shape index: {}]
  %s1 = inlined_call_operand.vmem [shape: f32[2,4,1], index: 1, kind: output, shape index: {}]
  %s2 = sld [smem:[#allocation0]]
  $region49: #{tpu_custom_call.1} parent=0
    _
  %s4 = ssub.s32 1, %s2
  %s5 = scalar_select 0, %s4, %s2
  $region1: #{tpu_custom_call.1} parent=0
    #allocation3 [shape = 'u8[8192]{0}', space=vmem, size = 0x2000, scoped, tag = 'input window, operand 0']
    #allocation4 [shape = 's32[2]{0}', space=sflag, size = 0x8, scoped, tag = 'scoped memory for tpu_custom_call.1']
    %6 = vsyncpa [#allocation4], 0
    %s7 = scalar_lea.sflag [#allocation4], 1
    %8 = vsyncpa %s7, 0
    loop: start=0, step=1, limit=4
    $region2: #{tpu_custom_call.1} parent=1 // loop_pre_header
      _
    $region3: #{tpu_custom_call.1} parent=1 // loop_header
      %s10 = sphi 0, %s14
      %p11 = scmp.ge.s32.totalorder %s10, 4
      %s17 = sphi 0, %s36
      %s18 = sphi 0, %s32
      %s19 = sphi 0, %s28
      %s20 = sphi 0, %s17
      %s21 = sphi 0, %s18
      %s22 = sphi 0, %s19
      %s23 = sphi 0, %s20
      %s24 = sphi 0, %s21
      %s25 = sphi 0, %s22
      %s43 = sphi 0, %s45
      %s46 = sphi 0, %s43
      %s47 = sphi 0, %s46
      %s63 = sphi 0, %s47
      %s71 = sphi 0, %s73
      %s74 = sphi 0, %s71
      %s75 = sphi 0, %s74
      %s91 = sphi 0, %s75
    $region4: #{tpu_custom_call.1} parent=1 // loop_header_branch
      %13 = sbr.rel (%p11) target = $region8
    $region5: #{tpu_custom_call.1} parent=1 // loop_body
      %s15 = ssub.s32 %s10, 1
      %s16 = ssub.s32 %s10, 2
      %s26 = sadd.s32 1, %s19
      %p27 = scmp.ge.s32.totalorder %s26, 1
      %s28 = scalar_select %p27, 0, %s26
      %s29 = sadd.s32 1, %s18
      %s30 = scalar_select %p27, %s29, %s18
      %p31 = scmp.ge.s32.totalorder %s30, 2
      %s32 = scalar_select %p31, 0, %s30
      %s33 = sadd.s32 1, %s17
      %s34 = scalar_select %p31, %s33, %s17
      %p35 = scmp.ge.s32.totalorder %s34, 1
      %s36 = scalar_select %p35, 0, %s34
      %s37 = sadd.s32 %s17, %s19
      %s38 = sadd.s32 %s36, %s28
      %s39 = ssub.s32 %s18, %s32
      %s40 = ssub.s32 %s37, %s38
      %s41 = sor.u32 %s39, %s40
      %p42 = scmp.eq.s32.totalorder %s41, 0
      %s44 = sadd.s32 %s43, 1
      %s45 = scalar_select %p42, %s43, %s44
      %p48 = pneg %p42
      %p49 = scmp.eq.s32.totalorder %s10, 1
      %p50 = por %p48, %p49
      %p51 = scmp.ne.s32.totalorder %s43, %s46
      %p52 = scmp.eq.s32.totalorder %s10, 0
      %p53 = por %p51, %p52
      %p54 = scmp.ne.s32.totalorder %s43, %s46
      %p55 = scmp.eq.s32.totalorder %s15, 1
      %p56 = por %p54, %p55
      %p57 = scmp.ne.s32.totalorder %s46, %s47
      %p58 = scmp.eq.s32.totalorder %s15, 0
      %p59 = por %p57, %p58
      %p60 = scmp.ne.s32.totalorder %s46, %s47
      %p61 = scmp.eq.s32.totalorder %s16, 1
      %p62 = por %p60, %p61
      %p64 = scmp.ne.s32.totalorder %s47, %s63
      %p65 = scmp.eq.s32.totalorder %s16, 0
      %p66 = por %p64, %p65
      %s67 = sadd.s32 %s18, %s17
      %s68 = sadd.s32 %s32, %s36
      %s69 = ssub.s32 %s67, %s68
      %p70 = scmp.eq.s32.totalorder %s69, 0
      %s72 = sadd.s32 %s71, 1
      %s73 = scalar_select %p70, %s71, %s72
      %p76 = pneg %p70
      %p77 = scmp.eq.s32.totalorder %s10, 1
      %p78 = por %p76, %p77
      %p79 = scmp.ne.s32.totalorder %s71, %s74
      %p80 = scmp.eq.s32.totalorder %s10, 0
      %p81 = por %p79, %p80
      %p82 = scmp.ne.s32.totalorder %s71, %s74
      %p83 = scmp.eq.s32.totalorder %s15, 1
      %p84 = por %p82, %p83
      %p85 = scmp.ne.s32.totalorder %s74, %s75
      %p86 = scmp.eq.s32.totalorder %s15, 0
      %p87 = por %p85, %p86
      %p88 = scmp.ne.s32.totalorder %s74, %s75
      %p89 = scmp.eq.s32.totalorder %s16, 1
      %p90 = por %p88, %p89
      %p92 = scmp.ne.s32.totalorder %s75, %s91
      %p93 = scmp.eq.s32.totalorder %s16, 0
      %p94 = por %p92, %p93
      %p95 = scmp.le.s32.totalorder 1, %s10
      %p96 = scmp.lt.s32.totalorder %s10, 3
      %p97 = pnand %p95, %p96
      %p98 = pneg %p97
      // Predicated region
      $region9: #{tpu_custom_call.1} parent=5 // pred_check
        _
      $region10: #{tpu_custom_call.1} parent=5 // pred_check_branch
        %100 = sbr.rel (%p97) target = $region12
      $region11: #{tpu_custom_call.1} parent=5 // pred_region
        %s101 = ssub.s32 %s10, 1
      $region12: #{tpu_custom_call.1} parent=5 // pred_fallthru
        _
      %p102 = scmp.lt.s32.totalorder %s10, 2
      // Predicated region
      $region13: #{tpu_custom_call.1} parent=5 // pred_check
        %p103 = pneg %p102
      $region14: #{tpu_custom_call.1} parent=5 // pred_check_branch
        %105 = sbr.rel (%p103) target = $region16
      $region15: #{tpu_custom_call.1} parent=5 // pred_region
        // Predicated region
        $region17: #{tpu_custom_call.1} parent=15 // pred_check
          %p106 = pneg %p53
        $region18: #{tpu_custom_call.1} parent=15 // pred_check_branch
          %108 = sbr.rel (%p106) target = $region20
        $region19: #{tpu_custom_call.1} parent=15 // pred_region
          %s109 = sand.u32 %s43, 1
          %s110 = scalar_lea.sflag [#allocation4], %s109
          %s111 = sand.u32 %s43, 1
          %s112 = smul.addr %s111, 8
          %s113 = scalar_lea.vmem [#allocation3], %s112
          %s114 = sadd.s32 %s17, %s19
          %s115 = smul.u32 2, %s114
          %s117 = ssub.s32 128, 128
          %118 = vsyncadd %s110, %s117
          %s119 = smul.addr %s18, 2
          %s120 = sadd.s32 %s115, %s119
          %s121 = smul.addr %s120, 64
          %s122 = scalar_lea.hbm %s0, %s121
          %s124 = sshll.u32 %s113, 4
          %s125 = int_to_ptr.vmem [resolvable:$true] %s124
          %127 = dma.hbm_to_vmem [thread:$0]  %s122, 128, %s125, %s110
        $region20: #{tpu_custom_call.1} parent=15 // pred_fallthru
          _
      $region16: #{tpu_custom_call.1} parent=5 // pred_fallthru
        _
      %p128 = scmp.le.s32.totalorder 1, %s10
      %p129 = scmp.lt.s32.totalorder %s10, 3
      %p130 = pnand %p128, %p129
      %p131 = pneg %p130
      // Predicated region
      $region21: #{tpu_custom_call.1} parent=5 // pred_check
        _
      $region22: #{tpu_custom_call.1} parent=5 // pred_check_branch
        %133 = sbr.rel (%p130) target = $region24
      $region23: #{tpu_custom_call.1} parent=5 // pred_region
        %s134 = ssub.s32 %s10, 1
        %s135 = sand.u32 %s46, 1
        %s136 = scalar_lea.sflag [#allocation4], %s135
        %s137 = sand.u32 %s46, 1
        %s138 = smul.addr %s137, 8
        %s139 = scalar_lea.vmem [#allocation3], %s138
        // Predicated region
        $region25: #{tpu_custom_call.1} parent=23 // pred_check
          %p140 = pneg %p59
        $region26: #{tpu_custom_call.1} parent=23 // pred_check_branch
          %142 = sbr.rel (%p140) target = $region28
        $region27: #{tpu_custom_call.1} parent=23 // pred_region
          %143 = dma.done %s136, 128
        $region28: #{tpu_custom_call.1} parent=23 // pred_fallthru
          _
        %s144 = sand.u32 %s46, 1
        %s145 = scalar_lea.sflag [#allocation4], %s144
        %s146 = sand.u32 %s46, 1
        %s147 = smul.addr %s146, 8
        %s148 = scalar_lea.vmem [#allocation3], %s147
        %p149 = pneg %p59
        %p150 = pneg %p56
        %p151 = pneg %p87
        %p152 = pneg %p84
        %s153 = sadd.s32 %s21, %s20
        %p154 = scmp.lt.s32.totalorder %s153, 1
        %s155 = scalar_select %p154, %s153, 1
        %s156 = smul.addr %s155, 4
        %s157 = scalar_lea.vmem %s1, %s156
        %s158 = sadd.s32 %s20, %s22
        %s159 = smul.u32 2, %s158
        %s160 = sadd.s32 %s21, %s20
        %p161 = scmp.lt.s32.totalorder %s160, 1
        %s162 = scalar_select %p161, %s160, 1
        %s163 = smul.addr %s162, 4
        %s164 = scalar_lea.vmem %s1, %s163
        %s165 = sadd.s32 %s21, %s20
        %p166 = scmp.eq.s32.totalorder %s22, 0
        // Predicated region
        $region29: #{tpu_custom_call.1} parent=23 // pred_check
          %p167 = pneg %p166
        $region30: #{tpu_custom_call.1} parent=23 // pred_check_branch
          %169 = sbr.rel (%p167) target = $region32
        $region31: #{tpu_custom_call.1} parent=23 // pred_region
          %170 = vst [vmem:[#allocation2] sm:$0xf] 0.0
        $region32: #{tpu_custom_call.1} parent=23 // pred_fallthru
          _
        %v171 = vld [vmem:[%s139] sm:$0xff]
        %v172 = vld [vmem:[#allocation2] sm:$0xf]
        %v173 = vadd.f32 %v172, %v171
        %v175 = vcombine.high %v171, %v171
        %v177 = vadd.f32 %v173, %v175
        %178 = vst [vmem:[#allocation2] sm:$0xf] %v177
        // Predicated region
        $region33: #{tpu_custom_call.1} parent=23 // pred_check
          %p179 = pneg %p166
        $region34: #{tpu_custom_call.1} parent=23 // pred_check_branch
          %181 = sbr.rel (%p179) target = $region36
        $region35: #{tpu_custom_call.1} parent=23 // pred_region
          %v182 = vld [vmem:[#allocation2] sm:$0xf]
          %vm183 = vcmask 1043456
          %v184 = vsel %vm183, %v182, 0.0
          %185 = vadd.xlane.f32.xlu0 %v184
          %v186 = vpop.xlane.xlu0 %185
          %vm187 = vcmask 3072
          %188 = vst.msk [vmem:[%s164] sm:$0xf] %vm187, %v186
        $region36: #{tpu_custom_call.1} parent=23 // pred_fallthru
          _
        %s189 = sadd.s32 %s21, %s20
        %p190 = scmp.lt.s32.totalorder %s189, 1
        %s191 = scalar_select %p190, %s189, 1
        %s192 = smul.addr %s191, 4
        %s193 = scalar_lea.vmem %s1, %s192
        // Predicated region
        $region37: #{tpu_custom_call.1} parent=23 // pred_check
          %p194 = pneg %p84
        $region38: #{tpu_custom_call.1} parent=23 // pred_check_branch
          %196 = sbr.rel (%p194) target = $region40
        $region39: #{tpu_custom_call.1} parent=23 // pred_region
          %s197 = sadd.s32 %s21, %s20
        $region40: #{tpu_custom_call.1} parent=23 // pred_fallthru
          _
      $region24: #{tpu_custom_call.1} parent=5 // pred_fallthru
        _
      %p198 = scmp.le.s32.totalorder 2, %s10
      // Predicated region
      $region41: #{tpu_custom_call.1} parent=5 // pred_check
        %p199 = pneg %p198
      $region42: #{tpu_custom_call.1} parent=5 // pred_check_branch
        %201 = sbr.rel (%p199) target = $region44
      $region43: #{tpu_custom_call.1} parent=5 // pred_region
        %s202 = ssub.s32 %s10, 2
        // Predicated region
        $region45: #{tpu_custom_call.1} parent=43 // pred_check
          %p203 = pneg %p90
        $region46: #{tpu_custom_call.1} parent=43 // pred_check_branch
          %205 = sbr.rel (%p203) target = $region48
        $region47: #{tpu_custom_call.1} parent=43 // pred_region
          %s206 = sadd.s32 %s24, %s23
          %p207 = scmp.lt.s32.totalorder %s206, 1
          %s208 = scalar_select %p207, %s206, 1
          %s209 = smul.addr %s208, 4
          %s210 = scalar_lea.vmem %s1, %s209
        $region48: #{tpu_custom_call.1} parent=43 // pred_fallthru
          _
      $region44: #{tpu_custom_call.1} parent=5 // pred_fallthru
        _
    $region6: #{tpu_custom_call.1} parent=1 // loop_footer
      %s14 = sadd.s32 1, %s10
    $region7: #{tpu_custom_call.1} parent=1 // loop_footer_branch
      %9 = sbr.rel target = $region3
    $region8: #{tpu_custom_call.1} parent=1 // loop_exit
      _
    %211 = vsyncpa [#allocation4], 1
    %s212 = scalar_lea.sflag [#allocation4], 1
    %213 = vsyncpa %s212, 1

</llo_original>
